<compile_context>
chip_gen: v7x
topology: tpu7x:2x2x1
jax: 0.10.0
libtpu: 0.0.40
codegen_flags: <defaults>
</compile_context>

<pallas_src>
import functools
import math

import jax
import jax.numpy as jnp
from jax import lax
from jax.experimental import pallas as pl
from jax.experimental.pallas import tpu as pltpu


# ------------------------------- helpers ------------------------------------


def _round_up(x, m):
    return ((x + m - 1) // m) * m


def _choose_tile(dim, preferred, align):
    """Pick a tile size (multiple of `align`, <= preferred) and the padded extent."""
    tile = min(preferred, _round_up(dim, align))
    padded = _round_up(dim, tile)
    return tile, padded


def _pad2d(a, rows, cols):
    pr, pc = rows - a.shape[0], cols - a.shape[1]
    if pr == 0 and pc == 0:
        return a
    return jnp.pad(a, ((0, pr), (0, pc)))


# ----------------------------- Pallas kernels --------------------------------


def _bayes_linear_mean_kernel(x_ref, mu_ref, b_ref, o_ref, acc_ref, *, compute_dtype):
    # out = x @ mu^T + bias, tiled over (M, N, K) with f32 accumulation.
    k = pl.program_id(2)

    @pl.when(k == 0)
    def _():
        acc_ref[...] = jnp.zeros_like(acc_ref)

    x = x_ref[...].astype(compute_dtype)      # (tm, tk)
    mu = mu_ref[...].astype(compute_dtype)    # (tn, tk)
    # Contract the in_features axes directly — no transpose of the weight tile.
    acc_ref[...] += lax.dot_general(
        x, mu, dimension_numbers=(((1,), (1,)), ((), ())),
        preferred_element_type=jnp.float32)

    @pl.when(k == pl.num_programs(2) - 1)
    def _():
        o_ref[...] = (acc_ref[...] + b_ref[...].astype(jnp.float32)).astype(o_ref.dtype)


def _bayes_linear_sample_kernel(x_ref, mu_ref, eps_ref, sigma_ref, b_ref, o_ref,
                                acc_ref, *, compute_dtype):
    # out = x @ mu^T + sigma^T * (x @ eps^T) + bias
    # (equivalent to x @ (mu + sigma*eps)^T + bias, since sigma is per output row of W)
    k = pl.program_id(2)

    @pl.when(k == 0)
    def _():
        acc_ref[...] = jnp.zeros_like(acc_ref)

    x = x_ref[...].astype(compute_dtype)        # (tm, tk)
    mu = mu_ref[...].astype(compute_dtype)      # (tn, tk)
    eps = eps_ref[...].astype(compute_dtype)    # (tn, tk)
    dims = (((1,), (1,)), ((), ()))
    acc_mu = lax.dot_general(x, mu, dims, preferred_element_type=jnp.float32)
    acc_eps = lax.dot_general(x, eps, dims, preferred_element_type=jnp.float32)
    # sigma_ref: (1, tn) f32 — scales output columns (rho broadcasts over in_features).
    acc_ref[...] += acc_mu + acc_eps * sigma_ref[...]

    @pl.when(k == pl.num_programs(2) - 1)
    def _():
        o_ref[...] = (acc_ref[...] + b_ref[...].astype(jnp.float32)).astype(o_ref.dtype)


# ------------------------------- JAX wrapper ----------------------------------


def bayesian_linear_forward(x, weight_mu, weight_rho, bias, *, sample=False, eps=None,
                            compute_dtype=None, tm_pref=256, tn_pref=256, tk_pref=512):
    """Pallas forward pass of BayesianLinear.

    x:          (..., in_features)
    weight_mu:  (out_features, in_features)
    weight_rho: (out_features, 1)
    bias:       (out_features,)
    eps:        (out_features, in_features), required when sample=True
    compute_dtype: dtype fed to the MXU (e.g. jnp.bfloat16 on v6e/v7x);
                   accumulation is always f32.
    """
    if sample and eps is None:
        raise ValueError("sample=True requires an `eps` array of shape (out, in)")

    orig_shape = x.shape
    if x.ndim != 2:
        x = x.reshape(-1, orig_shape[-1])

    M, K = x.shape
    N, K2 = weight_mu.shape
    assert K == K2, (K, K2)
    out_dtype = x.dtype
    compute_dtype = compute_dtype or x.dtype

    # Tile sizes (lane/sublane aligned) and padded extents.
    tm, Mp = _choose_tile(M, tm_pref, 8)
    tn, Np = _choose_tile(N, tn_pref, 128)
    tk, Kp = _choose_tile(K, tk_pref, 128)
    grid = (Mp // tm, Np // tn, Kp // tk)

    # Padded operands (zero padding is neutral for the reduction; padded output
    # rows/cols are sliced away).
    xp = _pad2d(x, Mp, Kp)
    mup = _pad2d(weight_mu, Np, Kp)
    bias2d = _pad2d(bias.reshape(1, N).astype(jnp.float32), 1, Np)

    x_spec = pl.BlockSpec((tm, tk), lambda i, j, k: (i, k))
    w_spec = pl.BlockSpec((tn, tk), lambda i, j, k: (j, k))
    row_spec = pl.BlockSpec((1, tn), lambda i, j, k: (0, j))
    out_spec = pl.BlockSpec((tm, tn), lambda i, j, k: (i, j))

    itm = jnp.dtype(x.dtype).itemsize
    itw = jnp.dtype(weight_mu.dtype).itemsize
    ito = jnp.dtype(out_dtype).itemsize
    n_weight_streams = 2 if sample else 1
    tile_bytes = (tm * tk * itm + n_weight_streams * tn * tk * itw
                  + tm * tn * ito + 2 * tn * 4)
    vmem_limit = int(2 * tile_bytes + tm * tn * 4 + (4 << 20))

    flops = (4 if sample else 2) * M * N * K + (2 if sample else 1) * M * N
    bytes_accessed = (M * K * itm + n_weight_streams * N * K * itw
                      + 2 * N * 4 + M * N * ito)
    cost = pl.CostEstimate(flops=flops, transcendentals=0,
                           bytes_accessed=bytes_accessed)

    compiler_params = pltpu.CompilerParams(
        dimension_semantics=("parallel", "parallel", "arbitrary"),
        vmem_limit_bytes=vmem_limit)

    out_shape = jax.ShapeDtypeStruct((Mp, Np), out_dtype)
    scratch = [pltpu.VMEM((tm, tn), jnp.float32)]

    if not sample:
        out_p = pl.pallas_call(
            functools.partial(_bayes_linear_mean_kernel, compute_dtype=compute_dtype),
            out_shape=out_shape,
            grid_spec=pltpu.PrefetchScalarGridSpec(
                num_scalar_prefetch=0, grid=grid,
                in_specs=[x_spec, w_spec, row_spec],
                out_specs=out_spec,
                scratch_shapes=scratch),
            compiler_params=compiler_params,
            cost_estimate=cost,
        )(xp, mup, bias2d)
    else:
        # sigma = softplus(rho), computed once in the wrapper (numerically safe),
        # passed as a lane-dense (1, N) row and broadcast per output column.
        sigma2d = _pad2d(
            jax.nn.softplus(weight_rho.astype(jnp.float32)).reshape(1, N), 1, Np)
        epsp = _pad2d(eps, Np, Kp)
        out_p = pl.pallas_call(
            functools.partial(_bayes_linear_sample_kernel, compute_dtype=compute_dtype),
            out_shape=out_shape,
            grid_spec=pltpu.PrefetchScalarGridSpec(
                num_scalar_prefetch=0, grid=grid,
                in_specs=[x_spec, w_spec, w_spec, row_spec, row_spec],
                out_specs=out_spec,
                scratch_shapes=scratch),
            compiler_params=compiler_params,
            cost_estimate=cost,
        )(xp, mup, epsp, sigma2d, bias2d)

    out = out_p[:M, :N]
    if len(orig_shape) != 2:
        out = out.reshape(*orig_shape[:-1], N)
    return out


# --------------------- parameter init (matches the PyTorch module) -----------


def init_bayesian_linear(key, in_features, out_features, ratio=0.5):
    fan_in = in_features
    total_var = 2.0 / fan_in
    noise_var = total_var * ratio
    mu_var = total_var - noise_var
    noise_std, mu_std = math.sqrt(noise_var), math.sqrt(mu_var)
    bound = math.sqrt(3.0) * mu_std
    rho_init = math.log(math.exp(noise_std) - 1.0)

    k_mu, _ = jax.random.split(key)
    weight_mu = jax.random.uniform(
        k_mu, (out_features, in_features), jnp.float32, minval=-bound, maxval=bound)
    bias = jnp.zeros((out_features,), jnp.float32)                 # uniform_(0, 0)
    weight_rho = jnp.full((out_features, 1), rho_init, jnp.float32)
    return weight_mu, weight_rho, bias


# ----------------------------------- main -------------------------------------


if __name__ == "__main__":
    in_features, out_features, batch = 32, 64, 8

    key = jax.random.PRNGKey(0)
    k_init, k_x, k_eps = jax.random.split(key, 3)

    weight_mu, weight_rho, bias = init_bayesian_linear(k_init, in_features, out_features)
    x = jax.random.normal(k_x, (batch, in_features), jnp.float32)
    # TODO(synk): epsilon is drawn host-side with jax.random (torch.distributions.Normal
    # sampling has no in-kernel equivalent here; pltpu PRNG could replace it if desired).
    eps = jax.random.normal(k_eps, (out_features, in_features), jnp.float32)

    # --- mean path (forward(input, sample=False), the default) ---
    out_mean = bayesian_linear_forward(x, weight_mu, weight_rho, bias, sample=False)
    out_mean = jax.block_until_ready(out_mean)
    ref_mean = x @ weight_mu.T + bias
    assert out_mean.shape == ref_mean.shape
    assert jnp.allclose(out_mean, ref_mean, atol=1e-5, rtol=1e-5)

    # --- sampled path (forward(input, sample=True)) ---
    out_samp = bayesian_linear_forward(
        x, weight_mu, weight_rho, bias, sample=True, eps=eps)
    out_samp = jax.block_until_ready(out_samp)
    sigma = jnp.log1p(jnp.exp(weight_rho))
    ref_samp = x @ (weight_mu + sigma * eps).T + bias
    assert out_samp.shape == ref_samp.shape
    assert jnp.allclose(out_samp, ref_samp, atol=1e-5, rtol=1e-5)

    print("KERNEL_OK")
</pallas_src>

<mosaic_0001>
module attributes {stable_mosaic.version = 11 : i64} {
  func.func @_bayes_linear_mean_kernel(%arg0: i32, %arg1: i32, %arg2: i32, %arg3: memref<8x128xf32, #tpu.memory_space<vmem>>, %arg4: memref<128x128xf32, #tpu.memory_space<vmem>>, %arg5: memref<1x128xf32, #tpu.memory_space<vmem>>, %arg6: memref<8x128xf32, #tpu.memory_space<vmem>>, %arg7: memref<8x128xf32, #tpu.memory_space<vmem>>) attributes {dimension_semantics = [#tpu.dimension_semantics<parallel>, #tpu.dimension_semantics<parallel>, #tpu.dimension_semantics<arbitrary>], iteration_bounds = array<i64: 1, 1, 1>, scalar_prefetch = 0 : i64, scratch_operands = 1 : i64, tpu.core_type = #tpu.core_type<tc>, window_params = [{transform_indices = @transform_0, window_bounds = array<i64: 8, 128>}, {transform_indices = @transform_1, window_bounds = array<i64: 128, 128>}, {transform_indices = @transform_2, window_bounds = array<i64: 1, 128>}, {transform_indices = @transform_3, window_bounds = array<i64: 8, 128>}]} {
    %c0_i32 = arith.constant 0 : i32
    %0 = arith.cmpi eq, %arg2, %c0_i32 : i32
    %1 = arith.extui %0 : i1 to i32
    %c0_i32_0 = arith.constant 0 : i32
    %2 = arith.cmpi ne, %1, %c0_i32_0 : i32
    scf.if %2 {
      %cst_10 = arith.constant 0.000000e+00 : f32
      %12 = vector.broadcast %cst_10 : f32 to vector<8x128xf32>
      %c0_11 = arith.constant 0 : index
      %c0_12 = arith.constant 0 : index
      %13 = vector.load %arg7[%c0_11, %c0_12] : memref<8x128xf32, #tpu.memory_space<vmem>>, vector<8x128xf32>
      tpu.vector_store %arg7[%c0_11, %c0_12], %12 {strides = array<i32>} : memref<8x128xf32, #tpu.memory_space<vmem>>, vector<8x128xf32>,
    } else {
    }
    %c0 = arith.constant 0 : index
    %c0_1 = arith.constant 0 : index
    %3 = vector.load %arg3[%c0, %c0_1] : memref<8x128xf32, #tpu.memory_space<vmem>>, vector<8x128xf32>
    %c0_2 = arith.constant 0 : index
    %c0_3 = arith.constant 0 : index
    %4 = vector.load %arg4[%c0_2, %c0_3] : memref<128x128xf32, #tpu.memory_space<vmem>>, vector<128x128xf32>
    %c0_4 = arith.constant 0 : index
    %c0_5 = arith.constant 0 : index
    %5 = vector.load %arg7[%c0_4, %c0_5] : memref<8x128xf32, #tpu.memory_space<vmem>>, vector<8x128xf32>
    %cst = arith.constant dense<0.000000e+00> : vector<8x128xf32>
    %6 = tpu.matmul %3, %4, %cst {dimension_numbers = #tpu.dot_dimension_numbers<[1], [1], [0], [0], [0, 0, 1, 0], [], []>} : vector<8x128xf32>, vector<128x128xf32>, vector<8x128xf32> -> vector<8x128xf32>
    %7 = arith.addf %5, %6 : vector<8x128xf32>
    %c0_6 = arith.constant 0 : index
    %c0_7 = arith.constant 0 : index
    %8 = vector.load %arg7[%c0_6, %c0_7] : memref<8x128xf32, #tpu.memory_space<vmem>>, vector<8x128xf32>
    tpu.vector_store %arg7[%c0_6, %c0_7], %7 {strides = array<i32>} : memref<8x128xf32, #tpu.memory_space<vmem>>, vector<8x128xf32>,
    %c0_i32_8 = arith.constant 0 : i32
    %9 = arith.cmpi eq, %arg2, %c0_i32_8 : i32
    %10 = arith.extui %9 : i1 to i32
    %c0_i32_9 = arith.constant 0 : i32
    %11 = arith.cmpi ne, %10, %c0_i32_9 : i32
    scf.if %11 {
      %c0_10 = arith.constant 0 : index
      %c0_11 = arith.constant 0 : index
      %12 = vector.load %arg7[%c0_10, %c0_11] : memref<8x128xf32, #tpu.memory_space<vmem>>, vector<8x128xf32>
      %c0_12 = arith.constant 0 : index
      %c0_13 = arith.constant 0 : index
      %13 = vector.load %arg5[%c0_12, %c0_13] : memref<1x128xf32, #tpu.memory_space<vmem>>, vector<1x128xf32>
      %14 = vector.broadcast %13 : vector<1x128xf32> to vector<8x128xf32>
      %15 = arith.addf %12, %14 : vector<8x128xf32>
      %c0_14 = arith.constant 0 : index
      %c0_15 = arith.constant 0 : index
      %16 = vector.load %arg6[%c0_14, %c0_15] : memref<8x128xf32, #tpu.memory_space<vmem>>, vector<8x128xf32>
      tpu.vector_store %arg6[%c0_14, %c0_15], %15 {strides = array<i32>} : memref<8x128xf32, #tpu.memory_space<vmem>>, vector<8x128xf32>,
    } else {
    }
    return
  }
  func.func @transform_0(%arg0: i32, %arg1: i32, %arg2: i32) -> (i32, i32) {
    %c0_i32 = arith.constant 0 : i32
    return %arg0, %arg2 : i32, i32
  }
  func.func @transform_1(%arg0: i32, %arg1: i32, %arg2: i32) -> (i32, i32) {
    %c0_i32 = arith.constant 0 : i32
    return %arg1, %arg2 : i32, i32
  }
  func.func @transform_2(%arg0: i32, %arg1: i32, %arg2: i32) -> (i32, i32) {
    %c0_i32 = arith.constant 0 : i32
    %c0_i32_0 = arith.constant 0 : i32
    return %c0_i32, %arg1 : i32, i32
  }
  func.func @transform_3(%arg0: i32, %arg1: i32, %arg2: i32) -> (i32, i32) {
    %c0_i32 = arith.constant 0 : i32
    return %arg0, %arg1 : i32, i32
  }
}

</mosaic_0001>

<llo_original>
// kernel: tpu_custom_call.1
$region0: #{tpu_custom_call.1}
  #allocation0 [shape = 'u32[]', space=smem, size = 0x4, offset = 0x4, fixed_abs, tag = 'smem constant byte address 0x4 - core index']
  #allocation1 [shape = 'u32[144,128]{1,0:T(1,128)}', space=vmem, size = 0x12000, scoped, tag = 'internal scratch']
  #allocation2 [shape = 'f32[8,128]{1,0:T(8,128)}', space=vmem, size = 0x1000, scoped, tag = 'scratch operand']
  %s0 = inlined_call_operand.hbm [shape: f32[8,128], index: 0, kind: input, shape index: {}]
  %s1 = inlined_call_operand.hbm [shape: f32[128,128], index: 1, kind: input, shape index: {}]
  %s2 = inlined_call_operand.vmem [shape: f32[1,128], index: 2, kind: input, shape index: {}]
  %s3 = inlined_call_operand.hbm [shape: f32[8,128], index: 3, kind: output, shape index: {}]
  %s4 = sld [smem:[#allocation0]]
  $region38: #{tpu_custom_call.1} parent=0
    _
  %s6 = ssub.s32 1, %s4
  %s7 = scalar_select 0, %s6, %s4
  $region1: #{tpu_custom_call.1} parent=0
    #allocation3 [shape = 'u8[4096]{0}', space=vmem, size = 0x1000, scoped, tag = 'input window, operand 0, single buffered']
    #allocation4 [shape = 's32[1]{0}', space=sflag, size = 0x4, scoped, tag = 'scoped memory for tpu_custom_call.1']
    #allocation5 [shape = 's32[1]{0}', space=sflag, size = 0x4, scoped, tag = 'scoped memory for tpu_custom_call.1']
    #allocation6 [shape = 'u8[65536]{0}', space=vmem, size = 0x10000, scoped, tag = 'input window, operand 1, single buffered']
    #allocation7 [shape = 's32[1]{0}', space=sflag, size = 0x4, scoped, tag = 'scoped memory for tpu_custom_call.1']
    #allocation8 [shape = 'u8[4096]{0}', space=vmem, size = 0x1000, scoped, tag = 'output window, operand 0, single buffered']
    %8 = vsyncpa [#allocation4], 0
    %9 = vsyncpa [#allocation7], 0
    %10 = vsyncpa [#allocation5], 0
    // Predicated region
    $region2: #{tpu_custom_call.1} parent=1 // pred_check
      _
    $region3: #{tpu_custom_call.1} parent=1 // pred_check_branch
      %12 = sbr.rel (0) target = $region5
    $region4: #{tpu_custom_call.1} parent=1 // pred_region
      %s14 = ssub.s32 128, 128
      %15 = vsyncadd [#allocation4], %s14
      %s17 = sshll.u32 [#allocation3], 4
      %s18 = int_to_ptr.vmem [resolvable:$true] %s17
      %20 = dma.hbm_to_vmem [thread:$0]  %s0, 128, %s18, [#allocation4]
    $region5: #{tpu_custom_call.1} parent=1 // pred_fallthru
      _
    // Predicated region
    $region6: #{tpu_custom_call.1} parent=1 // pred_check
      _
    $region7: #{tpu_custom_call.1} parent=1 // pred_check_branch
      %22 = sbr.rel (0) target = $region9
    $region8: #{tpu_custom_call.1} parent=1 // pred_region
      %s24 = ssub.s32 2048, 2048
      %25 = vsyncadd [#allocation7], %s24
      %s26 = sshll.u32 [#allocation6], 4
      %s27 = int_to_ptr.vmem [resolvable:$true] %s26
      %32 = dma.hbm_to_vmem [thread:$0]  %s1, 2048, %s27, [#allocation7], 128, 128, 8
    $region9: #{tpu_custom_call.1} parent=1 // pred_fallthru
      _
    // Predicated region
    $region10: #{tpu_custom_call.1} parent=1 // pred_check
      _
    $region11: #{tpu_custom_call.1} parent=1 // pred_check_branch
      %34 = sbr.rel (0) target = $region13
    $region12: #{tpu_custom_call.1} parent=1 // pred_region
      _
    $region13: #{tpu_custom_call.1} parent=1 // pred_fallthru
      _
    // Predicated region
    $region14: #{tpu_custom_call.1} parent=1 // pred_check
      _
    $region15: #{tpu_custom_call.1} parent=1 // pred_check_branch
      %36 = sbr.rel (0) target = $region17
    $region16: #{tpu_custom_call.1} parent=1 // pred_region
      %37 = dma.done [#allocation4], 128
    $region17: #{tpu_custom_call.1} parent=1 // pred_fallthru
      _
    // Predicated region
    $region18: #{tpu_custom_call.1} parent=1 // pred_check
      _
    $region19: #{tpu_custom_call.1} parent=1 // pred_check_branch
      %39 = sbr.rel (0) target = $region21
    $region20: #{tpu_custom_call.1} parent=1 // pred_region
      %40 = dma.done [#allocation7], 2048
    $region21: #{tpu_custom_call.1} parent=1 // pred_fallthru
      _
    %p41 = scmp.eq.s32.totalorder 0, 0
    // Predicated region
    $region22: #{tpu_custom_call.1} parent=1 // pred_check
      %p42 = pneg %p41
    $region23: #{tpu_custom_call.1} parent=1 // pred_check_branch
      %44 = sbr.rel (%p42) target = $region25
    $region24: #{tpu_custom_call.1} parent=1 // pred_region
      %45 = vst [vmem:[#allocation2] sm:$0xff] 0.0
    $region25: #{tpu_custom_call.1} parent=1 // pred_fallthru
      _
    %v46 = vld [vmem:[#allocation3] sm:$0xff]
    %v47 = vld [vmem:[#allocation6] sm:$0xff]
    %v48 = vld [vmem:[#allocation6 + $0x8] sm:$0xff]
    %v49 = vld [vmem:[#allocation6 + $0x10] sm:$0xff]
    %v50 = vld [vmem:[#allocation6 + $0x18] sm:$0xff]
    %v51 = vld [vmem:[#allocation6 + $0x20] sm:$0xff]
    %v52 = vld [vmem:[#allocation6 + $0x28] sm:$0xff]
    %v53 = vld [vmem:[#allocation6 + $0x30] sm:$0xff]
    %v54 = vld [vmem:[#allocation6 + $0x38] sm:$0xff]
    %v55 = vld [vmem:[#allocation6 + $0x40] sm:$0xff]
    %v56 = vld [vmem:[#allocation6 + $0x48] sm:$0xff]
    %v57 = vld [vmem:[#allocation6 + $0x50] sm:$0xff]
    %v58 = vld [vmem:[#allocation6 + $0x58] sm:$0xff]
    %v59 = vld [vmem:[#allocation6 + $0x60] sm:$0xff]
    %v60 = vld [vmem:[#allocation6 + $0x68] sm:$0xff]
    %v61 = vld [vmem:[#allocation6 + $0x70] sm:$0xff]
    %v62 = vld [vmem:[#allocation6 + $0x78] sm:$0xff]
    %v63 = vld [vmem:[#allocation2] sm:$0xff]
    %64 = vmatprep.subr.mxu0 0.0
    %65 = vmatpush1.xpose.msra.mxu0 %v47
    %66 = vmatprep.subr.mxu0 0.0
    %67 = vmatpush1.xpose.msra.mxu0 %v48
    %68 = vmatprep.subr.mxu0 0.0
    %69 = vmatpush1.xpose.msra.mxu0 %v49
    %70 = vmatprep.subr.mxu0 0.0
    %71 = vmatpush1.xpose.msra.mxu0 %v50
    %72 = vmatprep.subr.mxu0 0.0
    %73 = vmatpush1.xpose.msra.mxu0 %v51
    %74 = vmatprep.subr.mxu0 0.0
    %75 = vmatpush1.xpose.msra.mxu0 %v52
    %76 = vmatprep.subr.mxu0 0.0
    %77 = vmatpush1.xpose.msra.mxu0 %v53
    %78 = vmatprep.subr.mxu0 0.0
    %79 = vmatpush1.xpose.msra.mxu0 %v54
    %80 = vmatprep.subr.mxu0 0.0
    %81 = vmatpush1.xpose.msra.mxu0 %v55
    %82 = vmatprep.subr.mxu0 0.0
    %83 = vmatpush1.xpose.msra.mxu0 %v56
    %84 = vmatprep.subr.mxu0 0.0
    %85 = vmatpush1.xpose.msra.mxu0 %v57
    %86 = vmatprep.subr.mxu0 0.0
    %87 = vmatpush1.xpose.msra.mxu0 %v58
    %88 = vmatprep.subr.mxu0 0.0
    %89 = vmatpush1.xpose.msra.mxu0 %v59
    %90 = vmatprep.subr.mxu0 0.0
    %91 = vmatpush1.xpose.msra.mxu0 %v60
    %92 = vmatprep.subr.mxu0 0.0
    %93 = vmatpush1.xpose.msra.mxu0 %v61
    %94 = vmatprep.subr.mxu0 0.0
    %95 = vmatpush1.xpose.msra.mxu0 %v62
    %96 = vmatprep.subr.mxu0 0.0
    %97 = vmatpush1.xpose.msra.mxu0 0.0
    %98 = vmatprep.subr.mxu0 0.0
    %99 = vmatpush1.xpose.msra.mxu0 0.0
    %100 = vmatprep.subr.mxu0 0.0
    %101 = vmatpush1.xpose.msra.mxu0 0.0
    %102 = vmatprep.subr.mxu0 0.0
    %103 = vmatpush1.xpose.msra.mxu0 0.0
    %104 = vmatprep.subr.mxu0 0.0
    %105 = vmatpush1.xpose.msra.mxu0 0.0
    %106 = vmatprep.subr.mxu0 0.0
    %107 = vmatpush1.xpose.msra.mxu0 0.0
    %108 = vmatprep.subr.mxu0 0.0
    %109 = vmatpush1.xpose.msra.mxu0 0.0
    %110 = vmatprep.subr.mxu0 0.0
    %111 = vmatpush1.xpose.msra.mxu0 0.0
    %112 = vmatprep.subr.mxu0 0.0
    %113 = vmatpush1.xpose.msra.mxu0 0.0
    %114 = vmatprep.subr.mxu0 0.0
    %115 = vmatpush1.xpose.msra.mxu0 0.0
    %116 = vmatprep.subr.mxu0 0.0
    %117 = vmatpush1.xpose.msra.mxu0 0.0
    %118 = vmatprep.subr.mxu0 0.0
    %119 = vmatpush1.xpose.msra.mxu0 0.0
    %120 = vmatprep.subr.mxu0 0.0
    %121 = vmatpush1.xpose.msra.mxu0 0.0
    %122 = vmatprep.subr.mxu0 0.0
    %123 = vmatpush1.xpose.msra.mxu0 0.0
    %124 = vmatprep.subr.mxu0 0.0
    %125 = vmatpush1.xpose.msra.mxu0 0.0
    %126 = vmatprep.subr.mxu0 0.0
    %127 = vmatpush1.xpose.msra.mxu0 0.0
    %128 = vmatprep.mubr.f32.mxu0 0.0
    %129 = vmatmul.mubr.f32.gmra.mrb[0].mxu0 %v46
    %v130 = vpop.f32.mrb[0].mxu0
    %v131 = vadd.f32 0.0, %v130
    %v132 = vpop.f32.mrb[0].mxu0
    %133 = vdwg.mxu0
    %v134 = vadd.f32 %v63, %v131
    %135 = vst [vmem:[#allocation2] sm:$0xff] %v134
    // Predicated region
    $region26: #{tpu_custom_call.1} parent=1 // pred_check
      %p136 = pneg %p41
    $region27: #{tpu_custom_call.1} parent=1 // pred_check_branch
      %138 = sbr.rel (%p136) target = $region29
    $region28: #{tpu_custom_call.1} parent=1 // pred_region
      %v139 = vld [vmem:[#allocation2] sm:$0xff]
      %v140 = vld [vmem:[%s2] sm:$0x1]
      %v142 = vlaneseq
      %v143 = vshrl.u32 %v142, 7
      %v144 = vsub.s32 0, %v143
      %v145 = vrot.slane %v140, %v144
      %v147 = vadd.f32 %v139, %v145
      %148 = vst [vmem:[#allocation8] sm:$0xff] %v147
    $region29: #{tpu_custom_call.1} parent=1 // pred_fallthru
      _
    // Predicated region
    $region30: #{tpu_custom_call.1} parent=1 // pred_check
      _
    $region31: #{tpu_custom_call.1} parent=1 // pred_check_branch
      %150 = sbr.rel (0) target = $region33
    $region32: #{tpu_custom_call.1} parent=1 // pred_region
      %s152 = ssub.s32 128, 128
      %153 = vsyncadd [#allocation5], %s152
      %s155 = sshll.u32 [#allocation8], 4
      %s156 = int_to_ptr.vmem [resolvable:$true] %s155
      %158 = dma.vmem_to_hbm [thread:$0]  %s156, 128, %s3, [#allocation5]
    $region33: #{tpu_custom_call.1} parent=1 // pred_fallthru
      _
    // Predicated region
    $region34: #{tpu_custom_call.1} parent=1 // pred_check
      _
    $region35: #{tpu_custom_call.1} parent=1 // pred_check_branch
      %160 = sbr.rel (0) target = $region37
    $region36: #{tpu_custom_call.1} parent=1 // pred_region
      %161 = dma.done [#allocation5], 128
    $region37: #{tpu_custom_call.1} parent=1 // pred_fallthru
      _
    %162 = vsyncpa [#allocation4], 1
    %163 = vsyncpa [#allocation7], 1
    %164 = vsyncpa [#allocation5], 1

</llo_original>
